<compile_context>
chip_gen: v7x
topology: tpu7x:2x2x1
jax: 0.10.0
libtpu: 0.0.40
codegen_flags: <defaults>
</compile_context>

<pallas_src>
import math
import functools

import numpy as np
import jax
import jax.numpy as jnp
from jax.experimental import pallas as pl
from jax.experimental.pallas import tpu as pltpu


# ---------------------------------------------------------------------------
# helpers
# ---------------------------------------------------------------------------
def _nbytes(shape, dtype):
    n = 1
    for s in shape:
        n *= int(s)
    return n * jnp.dtype(dtype).itemsize


def _mosaic_params(semantics, vmem_bytes=None):
    kwargs = dict(dimension_semantics=semantics)
    # Default scoped VMEM is 16/32 MiB; raise it explicitly when our tiles need more.
    if vmem_bytes is not None and vmem_bytes > 30 * (1 << 20):
        kwargs["vmem_limit_bytes"] = int(min(vmem_bytes + (8 << 20), 120 << 20))
    return pltpu.CompilerParams(**kwargs)


def _choose_m_tile(m):
    """Pick an M tile; pad large non-divisible M instead of one whole-M block."""
    for t in (512, 256, 128):                      # 512 is safe across v5e/v6e/v7x VMEM budgets
        if m % t == 0:
            return t, m
    if m <= 1024:                                  # small M: single block equal to the array dim
        return m, m
    tm = 512
    return tm, ((m + tm - 1) // tm) * tm           # pad M up to a tile multiple


def _choose_batch_tile(b):
    if b <= 8:
        return b
    for t in (32, 16, 8):                          # keep TB a sublane multiple when tiling
        if b % t == 0:
            return t
    return b


def _choose_seq_tile(length):
    for t in (512, 256, 128):
        if length % t == 0:
            return t
    return length


# ---------------------------------------------------------------------------
# Kernel 1: fused QKV projection.  q/k/v arrive as three separate (M, Fin) arrays
# (no wrapper-side stack copy); weights are a cached (3, Fin, Dh) stack.
# ---------------------------------------------------------------------------
def _qkv_proj_kernel(q_ref, k_ref, v_ref, w_ref, b_ref, o_ref):
    for s, x_ref in enumerate((q_ref, k_ref, v_ref)):
        y = jnp.dot(x_ref[...], w_ref[s], preferred_element_type=jnp.float32) + b_ref[s]
        o_ref[s] = y.astype(o_ref.dtype)


def fused_qkv_projection(q2d, k2d, v2d, w_stack, b_stack, out_dtype):
    m, fin = q2d.shape
    dh = w_stack.shape[-1]
    tm, m_pad = _choose_m_tile(m)
    if m_pad != m:
        pad_cfg = ((0, m_pad - m), (0, 0))
        q2d, k2d, v2d = [jnp.pad(a, pad_cfg) for a in (q2d, k2d, v2d)]

    est = (2 * 3 * _nbytes((tm, fin), q2d.dtype)
           + 2 * _nbytes((3, tm, dh), out_dtype)
           + 2 * _nbytes((3, fin, dh), w_stack.dtype)
           + 2 * _nbytes((3, 1, dh), jnp.float32))

    out = pl.pallas_call(
        _qkv_proj_kernel,
        out_shape=jax.ShapeDtypeStruct((3, m_pad, dh), out_dtype),
        grid_spec=pltpu.PrefetchScalarGridSpec(
            num_scalar_prefetch=0,
            grid=(m_pad // tm,),
            in_specs=[
                pl.BlockSpec((tm, fin), lambda i: (i, 0)),
                pl.BlockSpec((tm, fin), lambda i: (i, 0)),
                pl.BlockSpec((tm, fin), lambda i: (i, 0)),
                pl.BlockSpec((3, fin, dh), lambda i: (0, 0, 0)),
                pl.BlockSpec((3, 1, dh), lambda i: (0, 0, 0)),
            ],
            out_specs=pl.BlockSpec((3, tm, dh), lambda i: (0, i, 0)),
        ),
        compiler_params=_mosaic_params(("parallel",), est),
    )(q2d, k2d, v2d, w_stack, b_stack)
    return out[:, :m] if m_pad != m else out


def _linear_kernel(x_ref, w_ref, b_ref, o_ref):
    y = jnp.dot(x_ref[...], w_ref[...], preferred_element_type=jnp.float32) + b_ref[...]
    o_ref[...] = y.astype(o_ref.dtype)


def linear_2d(x2d, w, b, out_dtype):
    """Fallback single linear (used only when q/k/v sequence lengths differ)."""
    m, fin = x2d.shape
    fout = w.shape[1]
    tm, m_pad = _choose_m_tile(m)
    if m_pad != m:
        x2d = jnp.pad(x2d, ((0, m_pad - m), (0, 0)))
    est = (2 * _nbytes((tm, fin), x2d.dtype) + 2 * _nbytes((tm, fout), out_dtype)
           + 2 * _nbytes((fin, fout), w.dtype))
    out = pl.pallas_call(
        _linear_kernel,
        out_shape=jax.ShapeDtypeStruct((m_pad, fout), out_dtype),
        grid_spec=pltpu.PrefetchScalarGridSpec(
            num_scalar_prefetch=0,
            grid=(m_pad // tm,),
            in_specs=[
                pl.BlockSpec((tm, fin), lambda i: (i, 0)),
                pl.BlockSpec((fin, fout), lambda i: (0, 0)),
                pl.BlockSpec((1, fout), lambda i: (0, 0)),
            ],
            out_specs=pl.BlockSpec((tm, fout), lambda i: (i, 0)),
        ),
        compiler_params=_mosaic_params(("parallel",), est),
    )(x2d, w, b)
    return out[:m] if m_pad != m else out


# ---------------------------------------------------------------------------
# Kernel 2: batched auto-correlation mean via a half-spectrum (rFFT-symmetric) real DFT.
#   mean_value[b, tau] = (1/(L*Dh)) * sum_f w_f * (Re X[b,f] cos(2*pi*f*tau/L)
#                                                  - Im X[b,f] sin(2*pi*f*tau/L))
# with X[b,f] = sum_d Qf[b,f,d] * conj(Kf[b,f,d]) — identical to
# mean_{h,c} irfft(rfft(q)*conj(rfft(k)), n=L).
# Analysis matrices ca/sa: (Lf_pad, L) in corr_dtype; synthesis cs/ss: (Lf_pad, L) f32 with the
# 1/2/1 half-spectrum weights and 1/(L*Dh) normalization folded in.  Re/Im stay in f32.
# ---------------------------------------------------------------------------
def _corr_mean_kernel(q_ref, k_ref, ca_ref, sa_ref, cs_ref, ss_ref, o_ref, *, tb, dh):
    f32 = jnp.float32
    ca = ca_ref[...]
    sa = sa_ref[...]
    adt = ca.dtype
    re_cols = []
    im_cols = []
    for b in range(tb):                                        # small static unroll over the tile
        qk = jnp.concatenate([q_ref[b].astype(adt), k_ref[b].astype(adt)], axis=1)  # (L, 2*Dh)
        c = jnp.dot(ca, qk, preferred_element_type=f32)        # (Lf_pad, 2*Dh)
        s = jnp.dot(sa, qk, preferred_element_type=f32)
        qc, kc = c[:, :dh], c[:, dh:]
        qs, ks = s[:, :dh], s[:, dh:]
        re_cols.append(jnp.sum(qc * kc + qs * ks, axis=1, keepdims=True))   # (Lf_pad, 1) f32
        im_cols.append(jnp.sum(qc * ks - qs * kc, axis=1, keepdims=True))
    re = re_cols[0] if tb == 1 else jnp.concatenate(re_cols, axis=1)        # (Lf_pad, TB) f32
    im = im_cols[0] if tb == 1 else jnp.concatenate(im_cols, axis=1)
    # One batched f32 synthesis matmul pair for the whole tile -> lane-dense (TB, L) store.
    mv = (jnp.dot(re.T, cs_ref[...], preferred_element_type=f32)
          - jnp.dot(im.T, ss_ref[...], preferred_element_type=f32))
    o_ref[...] = mv


def correlation_mean(q_proj, k_proj, dft_consts):
    b_total, seq_len, dh = q_proj.shape
    ca, sa, cs, ss = dft_consts
    lf_pad = ca.shape[0]
    tb = _choose_batch_tile(b_total)
    kernel = functools.partial(_corr_mean_kernel, tb=tb, dh=dh)

    est = (2 * 2 * _nbytes((tb, seq_len, dh), q_proj.dtype)            # double-buffered q/k tiles
           + 2 * _nbytes((lf_pad, seq_len), ca.dtype)                  # analysis constants
           + 2 * _nbytes((lf_pad, seq_len), jnp.float32)               # synthesis constants
           + 2 * _nbytes((tb, seq_len), jnp.float32)                   # output
           + 4 * _nbytes((lf_pad, 2 * dh), jnp.float32))               # analysis intermediates

    return pl.pallas_call(
        kernel,
        out_shape=jax.ShapeDtypeStruct((b_total, seq_len), jnp.float32),
        grid_spec=pltpu.PrefetchScalarGridSpec(
            num_scalar_prefetch=0,
            grid=(b_total // tb,),
            in_specs=[
                pl.BlockSpec((tb, seq_len, dh), lambda i: (i, 0, 0)),
                pl.BlockSpec((tb, seq_len, dh), lambda i: (i, 0, 0)),
                pl.BlockSpec((lf_pad, seq_len), lambda i: (0, 0)),     # constant DFT matrices
                pl.BlockSpec((lf_pad, seq_len), lambda i: (0, 0)),
                pl.BlockSpec((lf_pad, seq_len), lambda i: (0, 0)),
                pl.BlockSpec((lf_pad, seq_len), lambda i: (0, 0)),
            ],
            out_specs=pl.BlockSpec((tb, seq_len), lambda i: (i, 0)),   # lane-dense (B, L)
        ),
        compiler_params=_mosaic_params(("parallel",), est),
    )(q_proj, k_proj, ca, sa, cs, ss)


# ---------------------------------------------------------------------------
# Kernel 3: time-delay aggregation (weighted sum of circularly rolled values) fused with the
# output projection.  Sequence axis is tiled so the f32 accumulator is only (tL, Dh); the
# doubled-value scratch is in compute_dtype and populated once per batch under pl.when(l == 0).
# Softmax is done in the wrapper; normalized weights are SMEM scalars, delays arrive via
# scalar prefetch.
# ---------------------------------------------------------------------------
def _agg_out_kernel(idx_ref, w_ref, v_ref, wot_ref, bo_ref, o_ref, v2_ref,
                    *, top_k, seq_len, tl):
    b = pl.program_id(0)
    li = pl.program_id(1)

    @pl.when(li == 0)
    def _():
        v = v_ref[0]                                          # (L, Dh), compute dtype
        v2_ref[0:seq_len, :] = v                              # doubled buffer so a rolled window
        v2_ref[seq_len:2 * seq_len, :] = v                    # is a contiguous slice

    dh = v_ref.shape[2]
    base = li * tl
    acc = jnp.zeros((tl, dh), jnp.float32)
    for i in range(top_k):                                    # top_k = factor*log(L): small unroll
        d = idx_ref[i]                                        # delay (SMEM scalar via prefetch)
        w_i = w_ref[b, i]                                     # softmaxed weight (SMEM scalar)
        acc = acc + v2_ref[pl.ds(base + d, tl), :].astype(jnp.float32) * w_i
    out = jnp.dot(acc.astype(wot_ref.dtype), wot_ref[...],
                  preferred_element_type=jnp.float32) + bo_ref[...]
    o_ref[0] = out.astype(o_ref.dtype)


def delay_agg_output(idx, w_soft, v_proj, wo_t, bo_row):
    b_total, seq_len, dh = v_proj.shape
    hidden = wo_t.shape[1]
    top_k = int(idx.shape[0])
    tl = _choose_seq_tile(seq_len)
    kernel = functools.partial(_agg_out_kernel, top_k=top_k, seq_len=seq_len, tl=tl)

    est = (2 * _nbytes((1, seq_len, dh), v_proj.dtype)
           + _nbytes((2 * seq_len, dh), v_proj.dtype)
           + 2 * _nbytes((dh, hidden), wo_t.dtype)
           + 2 * _nbytes((1, tl, hidden), jnp.float32)
           + _nbytes((tl, dh), jnp.float32))

    return pl.pallas_call(
        kernel,
        out_shape=jax.ShapeDtypeStruct((b_total, seq_len, hidden), jnp.float32),
        grid_spec=pltpu.PrefetchScalarGridSpec(
            num_scalar_prefetch=1,                            # delays -> SMEM
            grid=(b_total, seq_len // tl),
            in_specs=[
                pl.BlockSpec(memory_space=pltpu.MemorySpace.SMEM),          # w_soft (B, top_k)
                pl.BlockSpec((1, seq_len, dh), lambda b, l, idx_r: (b, 0, 0)),
                pl.BlockSpec((dh, hidden), lambda b, l, idx_r: (0, 0)),
                pl.BlockSpec((1, hidden), lambda b, l, idx_r: (0, 0)),
            ],
            out_specs=pl.BlockSpec((1, tl, hidden), lambda b, l, idx_r: (b, l, 0)),
            scratch_shapes=[pltpu.VMEM((2 * seq_len, dh), v_proj.dtype)],
        ),
        compiler_params=_mosaic_params(("parallel", "arbitrary"), est),
    )(idx.astype(jnp.int32), w_soft.astype(jnp.float32), v_proj, wo_t, bo_row)


# ---------------------------------------------------------------------------
# Layer wrapper (parameter setup + glue: pad/truncate, top-k lag selection, softmax)
# ---------------------------------------------------------------------------
class AutoCorrelationLayerPallas:
    def __init__(self, input_features, hidden_features, heads, factor, flag, key,
                 compute_dtype=jnp.bfloat16, corr_dtype=jnp.float32):
        heads_features = hidden_features // heads * heads
        self.heads = heads
        self.factor = factor
        self.flag = flag
        self.compute_dtype = compute_dtype                    # MXU input dtype for proj/agg
        self.corr_dtype = corr_dtype                          # analysis-DFT dtype (f32 = strict)
        ks = jax.random.split(key, 8)

        def lin_init(kw, kb, fan_in, fan_out):
            bound = 1.0 / math.sqrt(fan_in)
            w = jax.random.uniform(kw, (fan_out, fan_in), jnp.float32, -bound, bound)
            b = jax.random.uniform(kb, (fan_out,), jnp.float32, -bound, bound)
            return w, b

        self.wq, self.bq = lin_init(ks[0], ks[1], input_features, heads_features)
        self.wk, self.bk = lin_init(ks[2], ks[3], input_features, heads_features)
        self.wv, self.bv = lin_init(ks[4], ks[5], input_features, heads_features)
        self.wo, self.bo = lin_init(ks[6], ks[7], heads_features, hidden_features)

        # Cached kernel-layout parameter masters (f32); cast per call (cheap: weights only).
        self._wqkv_t = jnp.stack([self.wq.T, self.wk.T, self.wv.T])            # (3, Fin, Dh)
        self._bqkv = jnp.stack([self.bq, self.bk, self.bv])[:, None, :]        # (3, 1, Dh)
        self._wo_t = self.wo.T                                                 # (Dh, hidden)
        self._bo_row = self.bo.reshape(1, -1)
        self._dft_cache = {}                                                   # (L,Dh,dtype) -> consts

    # -- half-spectrum real-DFT constants, built once per (L, Dh, dtype) ------------------
    def _dft_consts(self, seq_len, dh):
        cache_key = (seq_len, dh, jnp.dtype(self.corr_dtype).name)
        if cache_key not in self._dft_cache:
            lf = seq_len // 2 + 1
            lf_pad = max(8, ((lf + 7) // 8) * 8)
            f = np.arange(lf_pad, dtype=np.float64)
            t = np.arange(seq_len, dtype=np.float64)
            ang = (2.0 * np.pi / seq_len) * np.outer(f, t)
            valid = (f < lf)[:, None]
            cos_b = np.where(valid, np.cos(ang), 0.0)
            sin_b = np.where(valid, np.sin(ang), 0.0)
            w = np.full(lf_pad, 2.0)
            w[0] = 1.0
            if seq_len % 2 == 0:
                w[lf - 1] = 1.0                                # Nyquist bin weight 1
            w = np.where(f < lf, w, 0.0)
            scale = (w / (seq_len * dh))[:, None]
            self._dft_cache[cache_key] = (
                jnp.asarray(cos_b, self.corr_dtype),           # analysis (Lf_pad, L)
                jnp.asarray(sin_b, self.corr_dtype),
                jnp.asarray(cos_b * scale, jnp.float32),       # synthesis (Lf_pad, L), f32
                jnp.asarray(sin_b * scale, jnp.float32),
            )
        return self._dft_cache[cache_key]

    def __call__(self, query, key_t, value):
        if self.flag not in ("train", "test"):
            raise ValueError("The flag should be set to either 'train' or 'test'.")
        cd = self.compute_dtype
        q_b, q_l, f_in = query.shape
        k_l, v_l = key_t.shape[1], value.shape[1]

        w_stack = self._wqkv_t.astype(cd)
        b_stack = self._bqkv.astype(jnp.float32)
        dh = w_stack.shape[-1]

        if q_l == k_l == v_l:
            # One pallas_call, three MXU dots against the stacked weights; no activation copy.
            proj = fused_qkv_projection(
                query.reshape(q_b * q_l, f_in).astype(cd),
                key_t.reshape(q_b * k_l, f_in).astype(cd),
                value.reshape(q_b * v_l, f_in).astype(cd),
                w_stack, b_stack, cd)
            qp = proj[0].reshape(q_b, q_l, dh)
            kp = proj[1].reshape(q_b, k_l, dh)
            vp = proj[2].reshape(q_b, v_l, dh)
        else:
            qp = linear_2d(query.reshape(-1, f_in).astype(cd), w_stack[0], b_stack[0],
                           cd).reshape(q_b, q_l, dh)
            kp = linear_2d(key_t.reshape(-1, f_in).astype(cd), w_stack[1], b_stack[1],
                           cd).reshape(q_b, k_l, dh)
            vp = linear_2d(value.reshape(-1, f_in).astype(cd), w_stack[2], b_stack[2],
                           cd).reshape(q_b, v_l, dh)

        if q_l > v_l:                                          # glue: pad/truncate like torch
            pad = jnp.zeros((q_b, q_l - v_l, dh), qp.dtype)
            vp = jnp.concatenate([vp, pad], axis=1)
            kp = jnp.concatenate([kp, pad], axis=1)
        else:
            vp = vp[:, :q_l]
            kp = kp[:, :q_l]

        mv = correlation_mean(qp, kp, self._dft_consts(q_l, dh))          # (B, q_l) f32

        top_k = int(self.factor * math.log(q_l))
        assert top_k >= 1, "factor * log(seq_len) must be >= 1"
        # glue: tiny top-k lag selection + softmax over batch-averaged correlation (f32)
        _, idx = jax.lax.top_k(jnp.mean(mv, axis=0), top_k)               # (top_k,)
        weights = jnp.take(mv, idx, axis=1)                               # (B, top_k)
        w_soft = jax.nn.softmax(weights, axis=-1)

        return delay_agg_output(idx, w_soft, vp, self._wo_t.astype(cd), self._bo_row)


# ---------------------------------------------------------------------------
# Pure-JAX reference mirroring the PyTorch module (FFT path), for validation.
# ---------------------------------------------------------------------------
def reference_forward(layer, query, key_t, value):
    b_total, lq, _ = query.shape
    h = layer.heads
    q = (query @ layer.wq.T + layer.bq).reshape(b_total, lq, h, -1)
    k = (key_t @ layer.wk.T + layer.bk).reshape(b_total, key_t.shape[1], h, -1)
    v = (value @ layer.wv.T + layer.bv).reshape(b_total, value.shape[1], h, -1)
    if lq > v.shape[1]:
        z = jnp.zeros((b_total, lq - v.shape[1], q.shape[2], q.shape[3]), q.dtype)
        v = jnp.concatenate([v, z], axis=1)
        k = jnp.concatenate([k, z], axis=1)
    else:
        v = v[:, :lq]
        k = k[:, :lq]
    qf = jnp.fft.rfft(jnp.transpose(q, (0, 2, 3, 1)), axis=-1)
    kf = jnp.fft.rfft(jnp.transpose(k, (0, 2, 3, 1)), axis=-1)
    corr = jnp.fft.irfft(qf * jnp.conj(kf), n=lq, axis=-1)
    corr = jnp.transpose(corr, (0, 3, 1, 2))                              # (B, L, H, C)
    top_k = int(layer.factor * math.log(lq))
    mean_value = jnp.mean(jnp.mean(corr, axis=-1), axis=-1)               # (B, L)
    _, idx = jax.lax.top_k(jnp.mean(mean_value, axis=0), top_k)
    weights = jnp.take(mean_value, idx, axis=1)                           # (B, top_k)
    wsm = jax.nn.softmax(weights, axis=-1)
    agg = jnp.zeros_like(v)
    for i in range(top_k):
        rolled = jnp.roll(v, -idx[i], axis=1)
        agg = agg + rolled * wsm[:, i][:, None, None, None]
    return agg.reshape(b_total, lq, -1) @ layer.wo.T + layer.bo


if __name__ == "__main__":
    B, L, F_in, hidden, heads, factor = 2, 8, 16, 32, 4, 1
    key = jax.random.PRNGKey(0)
    k_params, k_q, k_k, k_v = jax.random.split(key, 4)

    # Strict-accuracy run in f32 (validated against the FFT reference).
    layer = AutoCorrelationLayerPallas(F_in, hidden, heads, factor, "train", k_params,
                                       compute_dtype=jnp.float32, corr_dtype=jnp.float32)
    query = jax.random.normal(k_q, (B, L, F_in), jnp.float32)
    key_t = jax.random.normal(k_k, (B, L, F_in), jnp.float32)
    value = jax.random.normal(k_v, (B, L, F_in), jnp.float32)

    out = jax.block_until_ready(layer(query, key_t, value))
    assert out.shape == (B, L, hidden)

    ref = jax.block_until_ready(reference_forward(layer, query, key_t, value))
    max_err = float(jnp.max(jnp.abs(out - ref)))
    assert jnp.allclose(out, ref, atol=1e-3, rtol=1e-3), max_err

    # Production-dtype smoke run: bf16 MXU inputs for proj/agg, correlation analysis kept in f32
    # (lag-selection accuracy), f32 accumulation everywhere.
    layer.compute_dtype = jnp.bfloat16
    out_bf16 = jax.block_until_ready(layer(query, key_t, value))
    assert out_bf16.shape == (B, L, hidden)
    assert bool(jnp.all(jnp.isfinite(out_bf16)))

    print("KERNEL_OK")
</pallas_src>

<mosaic_0001>
module attributes {stable_mosaic.version = 11 : i64} {
  func.func @_qkv_proj_kernel(%arg0: i32, %arg1: memref<16x16xf32, #tpu.memory_space<vmem>>, %arg2: memref<16x16xf32, #tpu.memory_space<vmem>>, %arg3: memref<16x16xf32, #tpu.memory_space<vmem>>, %arg4: memref<3x16x32xf32, #tpu.memory_space<vmem>>, %arg5: memref<3x1x32xf32, #tpu.memory_space<vmem>>, %arg6: memref<3x16x32xf32, #tpu.memory_space<vmem>>) attributes {dimension_semantics = [#tpu.dimension_semantics<parallel>], iteration_bounds = array<i64: 1>, scalar_prefetch = 0 : i64, scratch_operands = 0 : i64, tpu.core_type = #tpu.core_type<tc>, window_params = [{transform_indices = @transform_0, window_bounds = array<i64: 16, 16>}, {transform_indices = @transform_1, window_bounds = array<i64: 16, 16>}, {transform_indices = @transform_2, window_bounds = array<i64: 16, 16>}, {pipeline_mode = #tpu.pipeline_mode<synchronous>, transform_indices = @transform_3, window_bounds = array<i64: 3, 16, 32>}, {pipeline_mode = #tpu.pipeline_mode<synchronous>, transform_indices = @transform_4, window_bounds = array<i64: 3, 1, 32>}, {transform_indices = @transform_5, window_bounds = array<i64: 3, 16, 32>}]} {
    %c0 = arith.constant 0 : index
    %c0_0 = arith.constant 0 : index
    %0 = vector.load %arg1[%c0, %c0_0] : memref<16x16xf32, #tpu.memory_space<vmem>>, vector<16x16xf32>
    %c0_1 = arith.constant 0 : index
    %c0_2 = arith.constant 0 : index
    %c0_3 = arith.constant 0 : index
    %1 = vector.load %arg4[%c0_1, %c0_2, %c0_3] : memref<3x16x32xf32, #tpu.memory_space<vmem>>, vector<1x16x32xf32>
    %2 = vector.shape_cast %1 : vector<1x16x32xf32> to vector<16x32xf32>
    %cst = arith.constant dense<0.000000e+00> : vector<16x32xf32>
    %3 = tpu.matmul %0, %2, %cst {dimension_numbers = #tpu.dot_dimension_numbers<[1], [0], [0], [1], [0, 0, 1, 1], [], []>} : vector<16x16xf32>, vector<16x32xf32>, vector<16x32xf32> -> vector<16x32xf32>
    %c0_4 = arith.constant 0 : index
    %c0_5 = arith.constant 0 : index
    %c0_6 = arith.constant 0 : index
    %4 = vector.load %arg5[%c0_4, %c0_5, %c0_6] : memref<3x1x32xf32, #tpu.memory_space<vmem>>, vector<1x1x32xf32>
    %5 = vector.shape_cast %4 : vector<1x1x32xf32> to vector<1x32xf32>
    %6 = vector.broadcast %5 : vector<1x32xf32> to vector<16x32xf32>
    %7 = arith.addf %3, %6 : vector<16x32xf32>
    %c0_7 = arith.constant 0 : index
    %c0_8 = arith.constant 0 : index
    %c0_9 = arith.constant 0 : index
    %8 = vector.load %arg6[%c0_7, %c0_8, %c0_9] : memref<3x16x32xf32, #tpu.memory_space<vmem>>, vector<1x16x32xf32>
    %9 = vector.shape_cast %8 : vector<1x16x32xf32> to vector<16x32xf32>
    %10 = vector.shape_cast %7 : vector<16x32xf32> to vector<1x16x32xf32>
    tpu.vector_store %arg6[%c0_7, %c0_8, %c0_9], %10 {strides = array<i32>} : memref<3x16x32xf32, #tpu.memory_space<vmem>>, vector<1x16x32xf32>,
    %c0_10 = arith.constant 0 : index
    %c0_11 = arith.constant 0 : index
    %11 = vector.load %arg2[%c0_10, %c0_11] : memref<16x16xf32, #tpu.memory_space<vmem>>, vector<16x16xf32>
    %c1 = arith.constant 1 : index
    %c0_12 = arith.constant 0 : index
    %c0_13 = arith.constant 0 : index
    %12 = vector.load %arg4[%c1, %c0_12, %c0_13] : memref<3x16x32xf32, #tpu.memory_space<vmem>>, vector<1x16x32xf32>
    %13 = vector.shape_cast %12 : vector<1x16x32xf32> to vector<16x32xf32>
    %cst_14 = arith.constant dense<0.000000e+00> : vector<16x32xf32>
    %14 = tpu.matmul %11, %13, %cst_14 {dimension_numbers = #tpu.dot_dimension_numbers<[1], [0], [0], [1], [0, 0, 1, 1], [], []>} : vector<16x16xf32>, vector<16x32xf32>, vector<16x32xf32> -> vector<16x32xf32>
    %c1_15 = arith.constant 1 : index
    %c0_16 = arith.constant 0 : index
    %c0_17 = arith.constant 0 : index
    %15 = vector.load %arg5[%c1_15, %c0_16, %c0_17] : memref<3x1x32xf32, #tpu.memory_space<vmem>>, vector<1x1x32xf32>
    %16 = vector.shape_cast %15 : vector<1x1x32xf32> to vector<1x32xf32>
    %17 = vector.broadcast %16 : vector<1x32xf32> to vector<16x32xf32>
    %18 = arith.addf %14, %17 : vector<16x32xf32>
    %c1_18 = arith.constant 1 : index
    %c0_19 = arith.constant 0 : index
    %c0_20 = arith.constant 0 : index
    %19 = vector.load %arg6[%c1_18, %c0_19, %c0_20] : memref<3x16x32xf32, #tpu.memory_space<vmem>>, vector<1x16x32xf32>
    %20 = vector.shape_cast %19 : vector<1x16x32xf32> to vector<16x32xf32>
    %21 = vector.shape_cast %18 : vector<16x32xf32> to vector<1x16x32xf32>
    tpu.vector_store %arg6[%c1_18, %c0_19, %c0_20], %21 {strides = array<i32>} : memref<3x16x32xf32, #tpu.memory_space<vmem>>, vector<1x16x32xf32>,
    %c0_21 = arith.constant 0 : index
    %c0_22 = arith.constant 0 : index
    %22 = vector.load %arg3[%c0_21, %c0_22] : memref<16x16xf32, #tpu.memory_space<vmem>>, vector<16x16xf32>
    %c2 = arith.constant 2 : index
    %c0_23 = arith.constant 0 : index
    %c0_24 = arith.constant 0 : index
    %23 = vector.load %arg4[%c2, %c0_23, %c0_24] : memref<3x16x32xf32, #tpu.memory_space<vmem>>, vector<1x16x32xf32>
    %24 = vector.shape_cast %23 : vector<1x16x32xf32> to vector<16x32xf32>
    %cst_25 = arith.constant dense<0.000000e+00> : vector<16x32xf32>
    %25 = tpu.matmul %22, %24, %cst_25 {dimension_numbers = #tpu.dot_dimension_numbers<[1], [0], [0], [1], [0, 0, 1, 1], [], []>} : vector<16x16xf32>, vector<16x32xf32>, vector<16x32xf32> -> vector<16x32xf32>
    %c2_26 = arith.constant 2 : index
    %c0_27 = arith.constant 0 : index
    %c0_28 = arith.constant 0 : index
    %26 = vector.load %arg5[%c2_26, %c0_27, %c0_28] : memref<3x1x32xf32, #tpu.memory_space<vmem>>, vector<1x1x32xf32>
    %27 = vector.shape_cast %26 : vector<1x1x32xf32> to vector<1x32xf32>
    %28 = vector.broadcast %27 : vector<1x32xf32> to vector<16x32xf32>
    %29 = arith.addf %25, %28 : vector<16x32xf32>
    %c2_29 = arith.constant 2 : index
    %c0_30 = arith.constant 0 : index
    %c0_31 = arith.constant 0 : index
    %30 = vector.load %arg6[%c2_29, %c0_30, %c0_31] : memref<3x16x32xf32, #tpu.memory_space<vmem>>, vector<1x16x32xf32>
    %31 = vector.shape_cast %30 : vector<1x16x32xf32> to vector<16x32xf32>
    %32 = vector.shape_cast %29 : vector<16x32xf32> to vector<1x16x32xf32>
    tpu.vector_store %arg6[%c2_29, %c0_30, %c0_31], %32 {strides = array<i32>} : memref<3x16x32xf32, #tpu.memory_space<vmem>>, vector<1x16x32xf32>,
    return
  }
  func.func @transform_0(%arg0: i32) -> (i32, i32) {
    %c0_i32 = arith.constant 0 : i32
    %c0_i32_0 = arith.constant 0 : i32
    return %arg0, %c0_i32 : i32, i32
  }
  func.func @transform_1(%arg0: i32) -> (i32, i32) {
    %c0_i32 = arith.constant 0 : i32
    %c0_i32_0 = arith.constant 0 : i32
    return %arg0, %c0_i32 : i32, i32
  }
  func.func @transform_2(%arg0: i32) -> (i32, i32) {
    %c0_i32 = arith.constant 0 : i32
    %c0_i32_0 = arith.constant 0 : i32
    return %arg0, %c0_i32 : i32, i32
  }
  func.func @transform_3(%arg0: i32) -> (i32, i32, i32) {
    %c0_i32 = arith.constant 0 : i32
    %c0_i32_0 = arith.constant 0 : i32
    %c0_i32_1 = arith.constant 0 : i32
    %c0_i32_2 = arith.constant 0 : i32
    return %c0_i32, %c0_i32_0, %c0_i32_1 : i32, i32, i32
  }
  func.func @transform_4(%arg0: i32) -> (i32, i32, i32) {
    %c0_i32 = arith.constant 0 : i32
    %c0_i32_0 = arith.constant 0 : i32
    %c0_i32_1 = arith.constant 0 : i32
    %c0_i32_2 = arith.constant 0 : i32
    return %c0_i32, %c0_i32_0, %c0_i32_1 : i32, i32, i32
  }
  func.func @transform_5(%arg0: i32) -> (i32, i32, i32) {
    %c0_i32 = arith.constant 0 : i32
    %c0_i32_0 = arith.constant 0 : i32
    %c0_i32_1 = arith.constant 0 : i32
    return %c0_i32, %arg0, %c0_i32_0 : i32, i32, i32
  }
}

</mosaic_0001>

<llo_original>
// kernel: tpu_custom_call.1
$region0: #{tpu_custom_call.1}
  #allocation0 [shape = 'u32[]', space=smem, size = 0x4, offset = 0x4, fixed_abs, tag = 'smem constant byte address 0x4 - core index']
  #allocation1 [shape = 'u32[144,128]{1,0:T(1,128)}', space=vmem, size = 0x12000, scoped, tag = 'internal scratch']
  %s0 = inlined_call_operand.hbm [shape: f32[16,16], index: 0, kind: input, shape index: {}]
  %s1 = inlined_call_operand.hbm [shape: f32[16,16], index: 1, kind: input, shape index: {}]
  %s2 = inlined_call_operand.hbm [shape: f32[16,16], index: 2, kind: input, shape index: {}]
  %s3 = inlined_call_operand.hbm [shape: f32[3,16,32], index: 3, kind: input, shape index: {}]
  %s4 = inlined_call_operand.vmem [shape: f32[3,1,32], index: 4, kind: input, shape index: {}]
  %s5 = inlined_call_operand.hbm [shape: f32[3,16,32], index: 5, kind: output, shape index: {}]
  %s6 = sld [smem:[#allocation0]]
  $region46: #{tpu_custom_call.1} parent=0
    _
  %s8 = ssub.s32 1, %s6
  %s9 = scalar_select 0, %s8, %s6
  $region1: #{tpu_custom_call.1} parent=0
    #allocation2 [shape = 'u8[8192]{0}', space=vmem, size = 0x2000, scoped, tag = 'input window, operand 0, single buffered']
    #allocation3 [shape = 's32[1]{0}', space=sflag, size = 0x4, scoped, tag = 'scoped memory for tpu_custom_call.1']
    #allocation4 [shape = 's32[1]{0}', space=sflag, size = 0x4, scoped, tag = 'scoped memory for tpu_custom_call.1']
    #allocation5 [shape = 'u8[8192]{0}', space=vmem, size = 0x2000, scoped, tag = 'input window, operand 1, single buffered']
    #allocation6 [shape = 's32[1]{0}', space=sflag, size = 0x4, scoped, tag = 'scoped memory for tpu_custom_call.1']
    #allocation7 [shape = 'u8[8192]{0}', space=vmem, size = 0x2000, scoped, tag = 'input window, operand 2, single buffered']
    #allocation8 [shape = 'u8[24576]{0}', space=vmem, size = 0x6000, scoped, tag = 'input window, operand 3, single buffered']
    #allocation9 [shape = 's32[1]{0}', space=sflag, size = 0x4, scoped, tag = 'scoped memory for tpu_custom_call.1']
    #allocation10 [shape = 'u8[24576]{0}', space=vmem, size = 0x6000, scoped, tag = 'output window, operand 0, single buffered']
    %10 = vsyncpa [#allocation3], 0
    %11 = vsyncpa [#allocation6], 0
    %12 = vsyncpa [#allocation9], 0
    %13 = vsyncpa [#allocation4], 0
    // Predicated region
    $region2: #{tpu_custom_call.1} parent=1 // pred_check
      _
    $region3: #{tpu_custom_call.1} parent=1 // pred_check_branch
      %15 = sbr.rel (0) target = $region5
    $region4: #{tpu_custom_call.1} parent=1 // pred_region
      %s17 = ssub.s32 256, 256
      %18 = vsyncadd [#allocation3], %s17
      %s19 = sshll.u32 [#allocation2], 4
      %s20 = int_to_ptr.vmem [resolvable:$true] %s19
      %25 = dma.hbm_to_vmem [thread:$0]  %s0, 256, %s20, [#allocation3], 128, 128, 8
    $region5: #{tpu_custom_call.1} parent=1 // pred_fallthru
      _
    // Predicated region
    $region6: #{tpu_custom_call.1} parent=1 // pred_check
      _
    $region7: #{tpu_custom_call.1} parent=1 // pred_check_branch
      %27 = sbr.rel (0) target = $region9
    $region8: #{tpu_custom_call.1} parent=1 // pred_region
      %s29 = ssub.s32 256, 256
      %30 = vsyncadd [#allocation6], %s29
      %s31 = sshll.u32 [#allocation5], 4
      %s32 = int_to_ptr.vmem [resolvable:$true] %s31
      %37 = dma.hbm_to_vmem [thread:$0]  %s1, 256, %s32, [#allocation6], 128, 128, 8
    $region9: #{tpu_custom_call.1} parent=1 // pred_fallthru
      _
    // Predicated region
    $region10: #{tpu_custom_call.1} parent=1 // pred_check
      _
    $region11: #{tpu_custom_call.1} parent=1 // pred_check_branch
      %39 = sbr.rel (0) target = $region13
    $region12: #{tpu_custom_call.1} parent=1 // pred_region
      %s41 = ssub.s32 256, 256
      %42 = vsyncadd [#allocation6], %s41
      %s43 = sshll.u32 [#allocation7], 4
      %s44 = int_to_ptr.vmem [resolvable:$true] %s43
      %49 = dma.hbm_to_vmem [thread:$0]  %s2, 256, %s44, [#allocation6], 128, 128, 8
    $region13: #{tpu_custom_call.1} parent=1 // pred_fallthru
      _
    // Predicated region
    $region14: #{tpu_custom_call.1} parent=1 // pred_check
      _
    $region15: #{tpu_custom_call.1} parent=1 // pred_check_branch
      %51 = sbr.rel (0) target = $region17
    $region16: #{tpu_custom_call.1} parent=1 // pred_region
      %s53 = ssub.s32 768, 768
      %54 = vsyncadd [#allocation9], %s53
      %s55 = sshll.u32 [#allocation8], 4
      %s56 = int_to_ptr.vmem [resolvable:$true] %s55
      %61 = dma.hbm_to_vmem [thread:$0]  %s3, 768, %s56, [#allocation9], 128, 128, 8
    $region17: #{tpu_custom_call.1} parent=1 // pred_fallthru
      _
    // Predicated region
    $region18: #{tpu_custom_call.1} parent=1 // pred_check
      _
    $region19: #{tpu_custom_call.1} parent=1 // pred_check_branch
      %63 = sbr.rel (0) target = $region21
    $region20: #{tpu_custom_call.1} parent=1 // pred_region
      _
    $region21: #{tpu_custom_call.1} parent=1 // pred_fallthru
      _
    // Predicated region
    $region22: #{tpu_custom_call.1} parent=1 // pred_check
      _
    $region23: #{tpu_custom_call.1} parent=1 // pred_check_branch
      %65 = sbr.rel (0) target = $region25
    $region24: #{tpu_custom_call.1} parent=1 // pred_region
      %66 = dma.done [#allocation3], 256
    $region25: #{tpu_custom_call.1} parent=1 // pred_fallthru
      _
    // Predicated region
    $region26: #{tpu_custom_call.1} parent=1 // pred_check
      _
    $region27: #{tpu_custom_call.1} parent=1 // pred_check_branch
      %68 = sbr.rel (0) target = $region29
    $region28: #{tpu_custom_call.1} parent=1 // pred_region
      %69 = dma.done [#allocation6], 256
    $region29: #{tpu_custom_call.1} parent=1 // pred_fallthru
      _
    // Predicated region
    $region30: #{tpu_custom_call.1} parent=1 // pred_check
      _
    $region31: #{tpu_custom_call.1} parent=1 // pred_check_branch
      %71 = sbr.rel (0) target = $region33
    $region32: #{tpu_custom_call.1} parent=1 // pred_region
      %72 = dma.done [#allocation6], 256
    $region33: #{tpu_custom_call.1} parent=1 // pred_fallthru
      _
    // Predicated region
    $region34: #{tpu_custom_call.1} parent=1 // pred_check
      _
    $region35: #{tpu_custom_call.1} parent=1 // pred_check_branch
      %74 = sbr.rel (0) target = $region37
    $region36: #{tpu_custom_call.1} parent=1 // pred_region
      %75 = dma.done [#allocation9], 768
    $region37: #{tpu_custom_call.1} parent=1 // pred_fallthru
      _
    %v76 = vld [vmem:[#allocation2] sm:$0xff]
    %v77 = vld [vmem:[#allocation2 + $0x8] sm:$0xff]
    %v78 = vld [vmem:[#allocation8] sm:$0xff]
    %v79 = vld [vmem:[#allocation8 + $0x8] sm:$0xff]
    %v80 = vld [vmem:[%s4] sm:$0x1]
    %v82 = vlaneseq
    %v83 = vshrl.u32 %v82, 7
    %v84 = vsub.s32 0, %v83
    %v85 = vrot.slane %v80, %v84
    %vm87 = vcmask 130048
    %v89 = vsel %vm87, %v76, 0
    %v92 = vsel %vm87, %v77, 0
    %94 = vmatprep.subr.mxu0 0.0
    %95 = vmatpush1.msra.mxu0 %v78
    %96 = vmatprep.subr.mxu0 0.0
    %97 = vmatpush1.msra.mxu0 %v79
    %98 = vmatprep.subr.mxu0 0.0
    %99 = vmatpush1.msra.mxu0 0.0
    %100 = vmatprep.subr.mxu0 0.0
    %101 = vmatpush1.msra.mxu0 0.0
    %102 = vmatprep.subr.mxu0 0.0
    %103 = vmatpush1.msra.mxu0 0.0
    %104 = vmatprep.subr.mxu0 0.0
    %105 = vmatpush1.msra.mxu0 0.0
    %106 = vmatprep.subr.mxu0 0.0
    %107 = vmatpush1.msra.mxu0 0.0
    %108 = vmatprep.subr.mxu0 0.0
    %109 = vmatpush1.msra.mxu0 0.0
    %110 = vmatprep.subr.mxu0 0.0
    %111 = vmatpush1.msra.mxu0 0.0
    %112 = vmatprep.subr.mxu0 0.0
    %113 = vmatpush1.msra.mxu0 0.0
    %114 = vmatprep.subr.mxu0 0.0
    %115 = vmatpush1.msra.mxu0 0.0
    %116 = vmatprep.subr.mxu0 0.0
    %117 = vmatpush1.msra.mxu0 0.0
    %118 = vmatprep.subr.mxu0 0.0
    %119 = vmatpush1.msra.mxu0 0.0
    %120 = vmatprep.subr.mxu0 0.0
    %121 = vmatpush1.msra.mxu0 0.0
    %122 = vmatprep.subr.mxu0 0.0
    %123 = vmatpush1.msra.mxu0 0.0
    %124 = vmatprep.subr.mxu0 0.0
    %125 = vmatpush1.msra.mxu0 0.0
    %126 = vmatprep.subr.mxu0 0.0
    %127 = vmatpush1.msra.mxu0 0.0
    %128 = vmatprep.subr.mxu0 0.0
    %129 = vmatpush1.msra.mxu0 0.0
    %130 = vmatprep.subr.mxu0 0.0
    %131 = vmatpush1.msra.mxu0 0.0
    %132 = vmatprep.subr.mxu0 0.0
    %133 = vmatpush1.msra.mxu0 0.0
    %134 = vmatprep.subr.mxu0 0.0
    %135 = vmatpush1.msra.mxu0 0.0
    %136 = vmatprep.subr.mxu0 0.0
    %137 = vmatpush1.msra.mxu0 0.0
    %138 = vmatprep.subr.mxu0 0.0
    %139 = vmatpush1.msra.mxu0 0.0
    %140 = vmatprep.subr.mxu0 0.0
    %141 = vmatpush1.msra.mxu0 0.0
    %142 = vmatprep.subr.mxu0 0.0
    %143 = vmatpush1.msra.mxu0 0.0
    %144 = vmatprep.subr.mxu0 0.0
    %145 = vmatpush1.msra.mxu0 0.0
    %146 = vmatprep.subr.mxu0 0.0
    %147 = vmatpush1.msra.mxu0 0.0
    %148 = vmatprep.subr.mxu0 0.0
    %149 = vmatpush1.msra.mxu0 0.0
    %150 = vmatprep.subr.mxu0 0.0
    %151 = vmatpush1.msra.mxu0 0.0
    %152 = vmatprep.subr.mxu0 0.0
    %153 = vmatpush1.msra.mxu0 0.0
    %154 = vmatprep.subr.mxu0 0.0
    %155 = vmatpush1.msra.mxu0 0.0
    %156 = vmatprep.subr.mxu0 0.0
    %157 = vmatpush1.msra.mxu0 0.0
    %158 = vmatprep.mubr.f32.mxu0 0.0
    %159 = vmatmul.mubr.f32.gmra.mrb[0].mxu0 %v89
    %v160 = vpop.f32.mrb[0].mxu0
    %v161 = vadd.f32 %v85, %v160
    %v162 = vpop.f32.mrb[0].mxu0
    %163 = vmatprep.mubr.f32.mxu0 0.0
    %164 = vmatmul.mubr.f32.gmra.mrb[0].mxu0 %v92
    %v165 = vpop.f32.mrb[0].mxu0
    %v166 = vadd.f32 %v85, %v165
    %v167 = vpop.f32.mrb[0].mxu0
    %168 = vdwg.mxu0
    %vm169 = vcmask 261120
    %170 = vst.msk [vmem:[#allocation10] sm:$0xff] %vm169, %v161
    %171 = vst.msk [vmem:[#allocation10 + $0x8] sm:$0xff] %vm169, %v166
    %v172 = vld [vmem:[#allocation5] sm:$0xff]
    %v173 = vld [vmem:[#allocation5 + $0x8] sm:$0xff]
    %s174 = scalar_lea.vmem [#allocation8], 16
    %v175 = vld [vmem:[%s174] sm:$0xff]
    %v176 = vld [vmem:[%s174 + $0x8] sm:$0xff]
    %s177 = scalar_lea.vmem %s4, 1
    %v178 = vld [vmem:[%s177] sm:$0x1]
    %v180 = vlaneseq
    %v181 = vshrl.u32 %v180, 7
    %v182 = vsub.s32 0, %v181
    %v183 = vrot.slane %v178, %v182
    %v186 = vsel %vm87, %v172, 0
    %v189 = vsel %vm87, %v173, 0
    %191 = vmatprep.subr.mxu0 0.0
    %192 = vmatpush1.msra.mxu0 %v175
    %193 = vmatprep.subr.mxu0 0.0
    %194 = vmatpush1.msra.mxu0 %v176
    %195 = vmatprep.subr.mxu0 0.0
    %196 = vmatpush1.msra.mxu0 0.0
    %197 = vmatprep.subr.mxu0 0.0
    %198 = vmatpush1.msra.mxu0 0.0
    %199 = vmatprep.subr.mxu0 0.0
    %200 = vmatpush1.msra.mxu0 0.0
    %201 = vmatprep.subr.mxu0 0.0
    %202 = vmatpush1.msra.mxu0 0.0
    %203 = vmatprep.subr.mxu0 0.0
    %204 = vmatpush1.msra.mxu0 0.0
    %205 = vmatprep.subr.mxu0 0.0
    %206 = vmatpush1.msra.mxu0 0.0
    %207 = vmatprep.subr.mxu0 0.0
    %208 = vmatpush1.msra.mxu0 0.0
    %209 = vmatprep.subr.mxu0 0.0
    %210 = vmatpush1.msra.mxu0 0.0
    %211 = vmatprep.subr.mxu0 0.0
    %212 = vmatpush1.msra.mxu0 0.0
    %213 = vmatprep.subr.mxu0 0.0
    %214 = vmatpush1.msra.mxu0 0.0
    %215 = vmatprep.subr.mxu0 0.0
    %216 = vmatpush1.msra.mxu0 0.0
    %217 = vmatprep.subr.mxu0 0.0
    %218 = vmatpush1.msra.mxu0 0.0
    %219 = vmatprep.subr.mxu0 0.0
    %220 = vmatpush1.msra.mxu0 0.0
    %221 = vmatprep.subr.mxu0 0.0
    %222 = vmatpush1.msra.mxu0 0.0
    %223 = vmatprep.subr.mxu0 0.0
    %224 = vmatpush1.msra.mxu0 0.0
    %225 = vmatprep.subr.mxu0 0.0
    %226 = vmatpush1.msra.mxu0 0.0
    %227 = vmatprep.subr.mxu0 0.0
    %228 = vmatpush1.msra.mxu0 0.0
    %229 = vmatprep.subr.mxu0 0.0
    %230 = vmatpush1.msra.mxu0 0.0
    %231 = vmatprep.subr.mxu0 0.0
    %232 = vmatpush1.msra.mxu0 0.0
    %233 = vmatprep.subr.mxu0 0.0
    %234 = vmatpush1.msra.mxu0 0.0
    %235 = vmatprep.subr.mxu0 0.0
    %236 = vmatpush1.msra.mxu0 0.0
    %237 = vmatprep.subr.mxu0 0.0
    %238 = vmatpush1.msra.mxu0 0.0
    %239 = vmatprep.subr.mxu0 0.0
    %240 = vmatpush1.msra.mxu0 0.0
    %241 = vmatprep.subr.mxu0 0.0
    %242 = vmatpush1.msra.mxu0 0.0
    %243 = vmatprep.subr.mxu0 0.0
    %244 = vmatpush1.msra.mxu0 0.0
    %245 = vmatprep.subr.mxu0 0.0
    %246 = vmatpush1.msra.mxu0 0.0
    %247 = vmatprep.subr.mxu0 0.0
    %248 = vmatpush1.msra.mxu0 0.0
    %249 = vmatprep.subr.mxu0 0.0
    %250 = vmatpush1.msra.mxu0 0.0
    %251 = vmatprep.subr.mxu0 0.0
    %252 = vmatpush1.msra.mxu0 0.0
    %253 = vmatprep.subr.mxu0 0.0
    %254 = vmatpush1.msra.mxu0 0.0
    %255 = vmatprep.mubr.f32.mxu0 0.0
    %256 = vmatmul.mubr.f32.gmra.mrb[0].mxu0 %v186
    %v257 = vpop.f32.mrb[0].mxu0
    %v258 = vadd.f32 %v183, %v257
    %v259 = vpop.f32.mrb[0].mxu0
    %260 = vmatprep.mubr.f32.mxu0 0.0
    %261 = vmatmul.mubr.f32.gmra.mrb[0].mxu0 %v189
    %v262 = vpop.f32.mrb[0].mxu0
    %v263 = vadd.f32 %v183, %v262
    %v264 = vpop.f32.mrb[0].mxu0
    %265 = vdwg.mxu0
    %s266 = scalar_lea.vmem [#allocation10], 16
    %267 = vst.msk [vmem:[%s266] sm:$0xff] %vm169, %v258
    %268 = vst.msk [vmem:[%s266 + $0x8] sm:$0xff] %vm169, %v263
    %v269 = vld [vmem:[#allocation7] sm:$0xff]
    %v270 = vld [vmem:[#allocation7 + $0x8] sm:$0xff]
    %s271 = scalar_lea.vmem [#allocation8], 32
    %v272 = vld [vmem:[%s271] sm:$0xff]
    %v273 = vld [vmem:[%s271 + $0x8] sm:$0xff]
    %s274 = scalar_lea.vmem %s4, 2
    %v275 = vld [vmem:[%s274] sm:$0x1]
    %v277 = vlaneseq
    %v278 = vshrl.u32 %v277, 7
    %v279 = vsub.s32 0, %v278
    %v280 = vrot.slane %v275, %v279
    %v283 = vsel %vm87, %v269, 0
    %v286 = vsel %vm87, %v270, 0
    %288 = vmatprep.subr.mxu0 0.0
    %289 = vmatpush1.msra.mxu0 %v272
    %290 = vmatprep.subr.mxu0 0.0
    %291 = vmatpush1.msra.mxu0 %v273
    %292 = vmatprep.subr.mxu0 0.0
    %293 = vmatpush1.msra.mxu0 0.0
    %294 = vmatprep.subr.mxu0 0.0
    %295 = vmatpush1.msra.mxu0 0.0
    %296 = vmatprep.subr.mxu0 0.0
    %297 = vmatpush1.msra.mxu0 0.0
    %298 = vmatprep.subr.mxu0 0.0
    %299 = vmatpush1.msra.mxu0 0.0
    %300 = vmatprep.subr.mxu0 0.0
    %301 = vmatpush1.msra.mxu0 0.0
    %302 = vmatprep.subr.mxu0 0.0
    %303 = vmatpush1.msra.mxu0 0.0
    %304 = vmatprep.subr.mxu0 0.0
    %305 = vmatpush1.msra.mxu0 0.0
    %306 = vmatprep.subr.mxu0 0.0
    %307 = vmatpush1.msra.mxu0 0.0
    %308 = vmatprep.subr.mxu0 0.0
    %309 = vmatpush1.msra.mxu0 0.0
    %310 = vmatprep.subr.mxu0 0.0
    %311 = vmatpush1.msra.mxu0 0.0
    %312 = vmatprep.subr.mxu0 0.0
    %313 = vmatpush1.msra.mxu0 0.0
    %314 = vmatprep.subr.mxu0 0.0
    %315 = vmatpush1.msra.mxu0 0.0
    %316 = vmatprep.subr.mxu0 0.0
    %317 = vmatpush1.msra.mxu0 0.0
    %318 = vmatprep.subr.mxu0 0.0
    %319 = vmatpush1.msra.mxu0 0.0
    %320 = vmatprep.subr.mxu0 0.0
    %321 = vmatpush1.msra.mxu0 0.0
    %322 = vmatprep.subr.mxu0 0.0
    %323 = vmatpush1.msra.mxu0 0.0
    %324 = vmatprep.subr.mxu0 0.0
    %325 = vmatpush1.msra.mxu0 0.0
    %326 = vmatprep.subr.mxu0 0.0
    %327 = vmatpush1.msra.mxu0 0.0
    %328 = vmatprep.subr.mxu0 0.0
    %329 = vmatpush1.msra.mxu0 0.0
    %330 = vmatprep.subr.mxu0 0.0
    %331 = vmatpush1.msra.mxu0 0.0
    %332 = vmatprep.subr.mxu0 0.0
    %333 = vmatpush1.msra.mxu0 0.0
    %334 = vmatprep.subr.mxu0 0.0
    %335 = vmatpush1.msra.mxu0 0.0
    %336 = vmatprep.subr.mxu0 0.0
    %337 = vmatpush1.msra.mxu0 0.0
    %338 = vmatprep.subr.mxu0 0.0
    %339 = vmatpush1.msra.mxu0 0.0
    %340 = vmatprep.subr.mxu0 0.0
    %341 = vmatpush1.msra.mxu0 0.0
    %342 = vmatprep.subr.mxu0 0.0
    %343 = vmatpush1.msra.mxu0 0.0
    %344 = vmatprep.subr.mxu0 0.0
    %345 = vmatpush1.msra.mxu0 0.0
    %346 = vmatprep.subr.mxu0 0.0
    %347 = vmatpush1.msra.mxu0 0.0
    %348 = vmatprep.subr.mxu0 0.0
    %349 = vmatpush1.msra.mxu0 0.0
    %350 = vmatprep.subr.mxu0 0.0
    %351 = vmatpush1.msra.mxu0 0.0
    %352 = vmatprep.mubr.f32.mxu0 0.0
    %353 = vmatmul.mubr.f32.gmra.mrb[0].mxu0 %v283
    %v354 = vpop.f32.mrb[0].mxu0
    %v355 = vadd.f32 %v280, %v354
    %v356 = vpop.f32.mrb[0].mxu0
    %357 = vmatprep.mubr.f32.mxu0 0.0
    %358 = vmatmul.mubr.f32.gmra.mrb[0].mxu0 %v286
    %v359 = vpop.f32.mrb[0].mxu0
    %v360 = vadd.f32 %v280, %v359
    %v361 = vpop.f32.mrb[0].mxu0
    %362 = vdwg.mxu0
    %s363 = scalar_lea.vmem [#allocation10], 32
    %364 = vst.msk [vmem:[%s363] sm:$0xff] %vm169, %v355
    %365 = vst.msk [vmem:[%s363 + $0x8] sm:$0xff] %vm169, %v360
    // Predicated region
    $region38: #{tpu_custom_call.1} parent=1 // pred_check
      _
    $region39: #{tpu_custom_call.1} parent=1 // pred_check_branch
      %367 = sbr.rel (0) target = $region41
    $region40: #{tpu_custom_call.1} parent=1 // pred_region
      %s369 = ssub.s32 768, 768
      %370 = vsyncadd [#allocation4], %s369
      %s371 = sshll.u32 [#allocation10], 4
      %s372 = int_to_ptr.vmem [resolvable:$true] %s371
      %377 = dma.vmem_to_hbm [thread:$0]  %s372, 768, %s5, [#allocation4], 128, 128, 8
    $region41: #{tpu_custom_call.1} parent=1 // pred_fallthru
      _
    // Predicated region
    $region42: #{tpu_custom_call.1} parent=1 // pred_check
      _
    $region43: #{tpu_custom_call.1} parent=1 // pred_check_branch
      %379 = sbr.rel (0) target = $region45
    $region44: #{tpu_custom_call.1} parent=1 // pred_region
      %380 = dma.done [#allocation4], 768
    $region45: #{tpu_custom_call.1} parent=1 // pred_fallthru
      _
    %381 = vsyncpa [#allocation3], 1
    %382 = vsyncpa [#allocation6], 1
    %383 = vsyncpa [#allocation9], 1
    %384 = vsyncpa [#allocation4], 1

</llo_original>
